<compile_context>
chip_gen: v7x
topology: tpu7x:2x2x1
jax: 0.10.0
libtpu: 0.0.40
codegen_flags: <defaults>
</compile_context>

<pallas_src>
import jax
import jax.numpy as jnp
from jax.experimental import pallas as pl
from jax.experimental.pallas import tpu as pltpu

H1 = 400          # obs_net hidden
H2 = 300          # out_net hidden
H1_PAD = 512      # 400 padded to a lane multiple
H2_PAD = 384      # 300 padded to a lane multiple
TB_MAX = 1024     # max batch tile; sized for v5e's 16 MiB scoped VMEM (v6e/v7x have headroom)


def _round_up(n, m):
    return ((n + m - 1) // m) * m


def _cdiv(a, b):
    return -(-a // b)


def ddpg_critic_kernel(xa_ref, w1_ref, b1_ref, w2o_ref, w2a_ref, b2_ref,
                       w3_ref, b3_ref, out_ref):
    """One batch tile of DDPGCritic. xa = [x | a | 0...] in the matmul dtype (bf16)."""
    xa = xa_ref[...]                                            # (tb, IN_PAD) bf16

    # Layer 1: obs_net = Linear(obs, 400) + ReLU.  Action / pad rows of W1 are zero,
    # so xa @ W1 == x @ w1.  MXU matmul, f32 accumulation, f32 epilogue.
    h1 = jnp.dot(xa, w1_ref[...], preferred_element_type=jnp.float32)
    h1 = jnp.maximum(h1 + b1_ref[...], 0.0)

    # Layer 2: Linear(400 + act, 300) on concat([h1, a]) == h1 @ W2_obs + xa @ W2_act_full
    # (W2_act rows sit at the action's column offset inside the padded [x | a] layout).
    h2 = (jnp.dot(h1.astype(w2o_ref.dtype), w2o_ref[...],
                  preferred_element_type=jnp.float32)
          + jnp.dot(xa, w2a_ref[...], preferred_element_type=jnp.float32))
    h2 = jnp.maximum(h2 + b2_ref[...], 0.0)

    # Layer 3: Linear(300, 1).  Scalar head -> VPU multiply by the broadcast w3 row plus an
    # XLU lane-sum; store only the single real output column (no 128-lane write amplification).
    q = jnp.sum(h2 * w3_ref[...], axis=-1, keepdims=True) + b3_ref[...]
    out_ref[...] = q.astype(out_ref.dtype)


def init_params(key, obs_size, act_size):
    """PyTorch-style uniform(-1/sqrt(fan_in), +1/sqrt(fan_in)) init, natural (unpadded) layout."""
    ks = jax.random.split(key, 6)

    def lin(kw, kb, fan_in, fan_out):
        bound = float(fan_in) ** -0.5
        w = jax.random.uniform(kw, (fan_in, fan_out), jnp.float32, -bound, bound)
        b = jax.random.uniform(kb, (1, fan_out), jnp.float32, -bound, bound)
        return w, b

    w1, b1 = lin(ks[0], ks[1], obs_size, H1)
    w2, b2 = lin(ks[2], ks[3], H1 + act_size, H2)
    w3, b3 = lin(ks[4], ks[5], H2, 1)
    return {"w1": w1, "b1": b1, "w2": w2, "b2": b2, "w3": w3, "b3": b3}


def prepare_params(params, obs_size, act_size, matmul_dtype=jnp.bfloat16):
    """Pad/cast parameters ONCE into the kernel's lane-aligned layout (hoisted out of the
    per-call forward).  Zero padding is mathematically inert."""
    in_pad = _round_up(max(obs_size + act_size, 1), 128)
    f32 = jnp.float32
    w1 = jnp.zeros((in_pad, H1_PAD), f32).at[:obs_size, :H1].set(params["w1"])
    b1 = jnp.zeros((1, H1_PAD), f32).at[:, :H1].set(params["b1"].reshape(1, H1))
    w2o = jnp.zeros((H1_PAD, H2_PAD), f32).at[:H1, :H2].set(params["w2"][:H1])
    w2a = jnp.zeros((in_pad, H2_PAD), f32).at[obs_size:obs_size + act_size, :H2].set(
        params["w2"][H1:])
    b2 = jnp.zeros((1, H2_PAD), f32).at[:, :H2].set(params["b2"].reshape(1, H2))
    w3 = jnp.zeros((1, H2_PAD), f32).at[:, :H2].set(params["w3"].reshape(1, H2))
    b3 = params["b3"].reshape(1, 1).astype(f32)
    return {
        "obs_size": obs_size,
        "act_size": act_size,
        "in_pad": in_pad,
        "matmul_dtype": matmul_dtype,
        "w1": w1.astype(matmul_dtype),   # MXU operands in the matmul dtype
        "w2o": w2o.astype(matmul_dtype),
        "w2a": w2a.astype(matmul_dtype),
        "b1": b1, "b2": b2,              # biases stay f32 (f32 epilogues, v5e-friendly)
        "w3": w3,                        # f32: layer 3 is VPU mul + lane-sum, not an MXU matmul
        "b3": b3,
    }


def _batch_tiling(batch, tb_max=TB_MAX):
    # >= 2 grid steps whenever the batch allows, so v7x's 2 TensorCores both get work
    # (batch axis is marked "parallel"); tile derived from cdiv so padding stays small.
    min_steps = 2 if batch >= 32 else 1
    steps = max(min_steps, _cdiv(batch, tb_max))
    tb = _round_up(_cdiv(batch, steps), 16)   # 16-row alignment: full bf16 sublane packs
    steps = _cdiv(batch, tb)
    return tb, steps, steps * tb


def ddpg_critic_forward(x, a, prep):
    """x: [batch, obs_size] f32, a: [batch, act_size] f32 -> Q: [batch, 1] f32."""
    batch = x.shape[0]
    obs_size, act_size = prep["obs_size"], prep["act_size"]
    in_pad, mt = prep["in_pad"], prep["matmul_dtype"]

    tb, steps, batch_pad = _batch_tiling(batch)

    # Single lane-dense [x | a] tile in the matmul dtype: one DMA stream into the kernel,
    # no in-kernel casts or concat, zero rows/cols are inert.
    xa = jnp.zeros((batch_pad, in_pad), mt)
    xa = xa.at[:batch, :obs_size].set(x.astype(mt))
    xa = xa.at[:batch, obs_size:obs_size + act_size].set(a.astype(mt))

    w1, b1 = prep["w1"], prep["b1"]
    w2o, w2a, b2 = prep["w2o"], prep["w2a"], prep["b2"]
    w3, b3 = prep["w3"], prep["b3"]

    def resident(arr):
        # Same block index every grid step => stays VMEM-resident, no re-DMA.
        return pl.BlockSpec(arr.shape, lambda i: (0, 0))

    flops = 2 * batch_pad * (in_pad * H1_PAD + H1_PAD * H2_PAD + in_pad * H2_PAD + H2_PAD)
    bytes_accessed = (xa.size * xa.dtype.itemsize
                      + sum(int(t.size) * t.dtype.itemsize
                            for t in (w1, b1, w2o, w2a, b2, w3, b3))
                      + batch_pad * 4)

    out = pl.pallas_call(
        ddpg_critic_kernel,
        out_shape=jax.ShapeDtypeStruct((batch_pad, 1), jnp.float32),
        grid=(steps,),
        in_specs=[
            pl.BlockSpec((tb, in_pad), lambda i: (i, 0)),   # [x | a] tile along batch
            resident(w1), resident(b1),
            resident(w2o), resident(w2a), resident(b2),
            resident(w3), resident(b3),
        ],
        out_specs=pl.BlockSpec((tb, 1), lambda i: (i, 0)),  # narrow Q column
        compiler_params=pltpu.CompilerParams(
            dimension_semantics=("parallel",)),
        cost_estimate=pl.CostEstimate(flops=flops, transcendentals=0,
                                      bytes_accessed=bytes_accessed),
    )(xa, w1, b1, w2o, w2a, b2, w3, b3)

    return out[:batch]   # strip batch padding; output is already [batch, 1]


def ref_forward(x, a, params, matmul_dtype=jnp.bfloat16):
    """Pure-JAX reference mirroring the kernel's numeric policy (bf16 MXU inputs / f32 acc)."""
    mt, f32 = matmul_dtype, jnp.float32
    w1 = params["w1"].astype(mt)
    w2o = params["w2"][:H1].astype(mt)
    w2a = params["w2"][H1:].astype(mt)
    h1 = jnp.maximum(
        jnp.dot(x.astype(mt), w1, preferred_element_type=f32)
        + params["b1"].reshape(1, H1), 0.0)
    h2 = jnp.maximum(
        jnp.dot(h1.astype(mt), w2o, preferred_element_type=f32)
        + jnp.dot(a.astype(mt), w2a, preferred_element_type=f32)
        + params["b2"].reshape(1, H2), 0.0)
    return jnp.dot(h2, params["w3"]) + params["b3"].reshape(1, 1)


if __name__ == "__main__":
    obs_size, act_size, batch = 8, 4, 2
    key = jax.random.PRNGKey(0)
    k_param, k_x, k_a = jax.random.split(key, 3)
    params = init_params(k_param, obs_size, act_size)
    prep = prepare_params(params, obs_size, act_size)     # padded/cast once, reused per call

    x = jax.random.normal(k_x, (batch, obs_size), jnp.float32)
    a = jax.random.normal(k_a, (batch, act_size), jnp.float32)

    out = jax.block_until_ready(ddpg_critic_forward(x, a, prep))
    ref = ref_forward(x, a, params)

    assert out.shape == (batch, 1), out.shape
    assert jnp.allclose(out, ref, atol=1e-2, rtol=1e-2), (out, ref)
    print("KERNEL_OK")
</pallas_src>

<mosaic_0001>
module attributes {stable_mosaic.version = 11 : i64} {
  func.func @ddpg_critic_kernel(%arg0: i32, %arg1: memref<16x128xbf16, #tpu.memory_space<vmem>>, %arg2: memref<128x512xbf16, #tpu.memory_space<vmem>>, %arg3: memref<1x512xf32, #tpu.memory_space<vmem>>, %arg4: memref<512x384xbf16, #tpu.memory_space<vmem>>, %arg5: memref<128x384xbf16, #tpu.memory_space<vmem>>, %arg6: memref<1x384xf32, #tpu.memory_space<vmem>>, %arg7: memref<1x384xf32, #tpu.memory_space<vmem>>, %arg8: memref<1x1xf32, #tpu.memory_space<vmem>>, %arg9: memref<16x1xf32, #tpu.memory_space<vmem>>) attributes {dimension_semantics = [#tpu.dimension_semantics<parallel>], iteration_bounds = array<i64: 1>, scalar_prefetch = 0 : i64, scratch_operands = 0 : i64, tpu.core_type = #tpu.core_type<tc>, window_params = [{transform_indices = @transform_0, window_bounds = array<i64: 16, 128>}, {pipeline_mode = #tpu.pipeline_mode<synchronous>, transform_indices = @transform_1, window_bounds = array<i64: 128, 512>}, {pipeline_mode = #tpu.pipeline_mode<synchronous>, transform_indices = @transform_2, window_bounds = array<i64: 1, 512>}, {pipeline_mode = #tpu.pipeline_mode<synchronous>, transform_indices = @transform_3, window_bounds = array<i64: 512, 384>}, {pipeline_mode = #tpu.pipeline_mode<synchronous>, transform_indices = @transform_4, window_bounds = array<i64: 128, 384>}, {pipeline_mode = #tpu.pipeline_mode<synchronous>, transform_indices = @transform_5, window_bounds = array<i64: 1, 384>}, {pipeline_mode = #tpu.pipeline_mode<synchronous>, transform_indices = @transform_6, window_bounds = array<i64: 1, 384>}, {pipeline_mode = #tpu.pipeline_mode<synchronous>, transform_indices = @transform_7, window_bounds = array<i64: 1, 1>}, {transform_indices = @transform_8, window_bounds = array<i64: 16, 1>}]} {
    %c0 = arith.constant 0 : index
    %c0_0 = arith.constant 0 : index
    %0 = vector.load %arg1[%c0, %c0_0] : memref<16x128xbf16, #tpu.memory_space<vmem>>, vector<16x128xbf16>
    %c0_1 = arith.constant 0 : index
    %c0_2 = arith.constant 0 : index
    %1 = vector.load %arg2[%c0_1, %c0_2] : memref<128x512xbf16, #tpu.memory_space<vmem>>, vector<128x512xbf16>
    %cst = arith.constant dense<0.000000e+00> : vector<16x512xf32>
    %2 = tpu.matmul %0, %1, %cst {dimension_numbers = #tpu.dot_dimension_numbers<[1], [0], [0], [1], [0, 0, 1, 1], [], []>} : vector<16x128xbf16>, vector<128x512xbf16>, vector<16x512xf32> -> vector<16x512xf32>
    %c0_3 = arith.constant 0 : index
    %c0_4 = arith.constant 0 : index
    %3 = vector.load %arg3[%c0_3, %c0_4] : memref<1x512xf32, #tpu.memory_space<vmem>>, vector<1x512xf32>
    %4 = vector.broadcast %3 : vector<1x512xf32> to vector<16x512xf32>
    %5 = arith.addf %2, %4 : vector<16x512xf32>
    %cst_5 = arith.constant 0.000000e+00 : f32
    %6 = vector.broadcast %cst_5 : f32 to vector<16x512xf32>
    %7 = arith.maximumf %5, %6 : vector<16x512xf32>
    %8 = arith.truncf %7 : vector<16x512xf32> to vector<16x512xbf16>
    %c0_6 = arith.constant 0 : index
    %c0_7 = arith.constant 0 : index
    %9 = vector.load %arg4[%c0_6, %c0_7] : memref<512x384xbf16, #tpu.memory_space<vmem>>, vector<512x384xbf16>
    %cst_8 = arith.constant dense<0.000000e+00> : vector<16x384xf32>
    %10 = tpu.matmul %8, %9, %cst_8 {dimension_numbers = #tpu.dot_dimension_numbers<[1], [0], [0], [1], [0, 0, 1, 1], [], []>} : vector<16x512xbf16>, vector<512x384xbf16>, vector<16x384xf32> -> vector<16x384xf32>
    %c0_9 = arith.constant 0 : index
    %c0_10 = arith.constant 0 : index
    %11 = vector.load %arg5[%c0_9, %c0_10] : memref<128x384xbf16, #tpu.memory_space<vmem>>, vector<128x384xbf16>
    %cst_11 = arith.constant dense<0.000000e+00> : vector<16x384xf32>
    %12 = tpu.matmul %0, %11, %cst_11 {dimension_numbers = #tpu.dot_dimension_numbers<[1], [0], [0], [1], [0, 0, 1, 1], [], []>} : vector<16x128xbf16>, vector<128x384xbf16>, vector<16x384xf32> -> vector<16x384xf32>
    %13 = arith.addf %10, %12 : vector<16x384xf32>
    %c0_12 = arith.constant 0 : index
    %c0_13 = arith.constant 0 : index
    %14 = vector.load %arg6[%c0_12, %c0_13] : memref<1x384xf32, #tpu.memory_space<vmem>>, vector<1x384xf32>
    %15 = vector.broadcast %14 : vector<1x384xf32> to vector<16x384xf32>
    %16 = arith.addf %13, %15 : vector<16x384xf32>
    %cst_14 = arith.constant 0.000000e+00 : f32
    %17 = vector.broadcast %cst_14 : f32 to vector<16x384xf32>
    %18 = arith.maximumf %16, %17 : vector<16x384xf32>
    %c0_15 = arith.constant 0 : index
    %c0_16 = arith.constant 0 : index
    %19 = vector.load %arg7[%c0_15, %c0_16] : memref<1x384xf32, #tpu.memory_space<vmem>>, vector<1x384xf32>
    %20 = vector.broadcast %19 : vector<1x384xf32> to vector<16x384xf32>
    %21 = arith.mulf %18, %20 : vector<16x384xf32>
    %cst_17 = arith.constant dense<0.000000e+00> : vector<16xf32>
    %22 = vector.multi_reduction <add>, %21, %cst_17 [1] : vector<16x384xf32> to vector<16xf32>
    %23 = vector.shape_cast %22 : vector<16xf32> to vector<16x1xf32>
    %c0_18 = arith.constant 0 : index
    %c0_19 = arith.constant 0 : index
    %24 = vector.load %arg8[%c0_18, %c0_19] : memref<1x1xf32, #tpu.memory_space<vmem>>, vector<1x1xf32>
    %25 = vector.broadcast %24 : vector<1x1xf32> to vector<16x1xf32>
    %26 = arith.addf %23, %25 : vector<16x1xf32>
    %c0_20 = arith.constant 0 : index
    %c0_21 = arith.constant 0 : index
    %27 = vector.load %arg9[%c0_20, %c0_21] : memref<16x1xf32, #tpu.memory_space<vmem>>, vector<16x1xf32>
    tpu.vector_store %arg9[%c0_20, %c0_21], %26 {strides = array<i32>} : memref<16x1xf32, #tpu.memory_space<vmem>>, vector<16x1xf32>,
    return
  }
  func.func @transform_0(%arg0: i32) -> (i32, i32) {
    %c0_i32 = arith.constant 0 : i32
    %c0_i32_0 = arith.constant 0 : i32
    return %arg0, %c0_i32 : i32, i32
  }
  func.func @transform_1(%arg0: i32) -> (i32, i32) {
    %c0_i32 = arith.constant 0 : i32
    %c0_i32_0 = arith.constant 0 : i32
    %c0_i32_1 = arith.constant 0 : i32
    return %c0_i32, %c0_i32_0 : i32, i32
  }
  func.func @transform_2(%arg0: i32) -> (i32, i32) {
    %c0_i32 = arith.constant 0 : i32
    %c0_i32_0 = arith.constant 0 : i32
    %c0_i32_1 = arith.constant 0 : i32
    return %c0_i32, %c0_i32_0 : i32, i32
  }
  func.func @transform_3(%arg0: i32) -> (i32, i32) {
    %c0_i32 = arith.constant 0 : i32
    %c0_i32_0 = arith.constant 0 : i32
    %c0_i32_1 = arith.constant 0 : i32
    return %c0_i32, %c0_i32_0 : i32, i32
  }
  func.func @transform_4(%arg0: i32) -> (i32, i32) {
    %c0_i32 = arith.constant 0 : i32
    %c0_i32_0 = arith.constant 0 : i32
    %c0_i32_1 = arith.constant 0 : i32
    return %c0_i32, %c0_i32_0 : i32, i32
  }
  func.func @transform_5(%arg0: i32) -> (i32, i32) {
    %c0_i32 = arith.constant 0 : i32
    %c0_i32_0 = arith.constant 0 : i32
    %c0_i32_1 = arith.constant 0 : i32
    return %c0_i32, %c0_i32_0 : i32, i32
  }
  func.func @transform_6(%arg0: i32) -> (i32, i32) {
    %c0_i32 = arith.constant 0 : i32
    %c0_i32_0 = arith.constant 0 : i32
    %c0_i32_1 = arith.constant 0 : i32
    return %c0_i32, %c0_i32_0 : i32, i32
  }
  func.func @transform_7(%arg0: i32) -> (i32, i32) {
    %c0_i32 = arith.constant 0 : i32
    %c0_i32_0 = arith.constant 0 : i32
    %c0_i32_1 = arith.constant 0 : i32
    return %c0_i32, %c0_i32_0 : i32, i32
  }
  func.func @transform_8(%arg0: i32) -> (i32, i32) {
    %c0_i32 = arith.constant 0 : i32
    %c0_i32_0 = arith.constant 0 : i32
    return %arg0, %c0_i32 : i32, i32
  }
}

</mosaic_0001>

<llo_original>
// kernel: tpu_custom_call.1
$region0: #{tpu_custom_call.1}
  #allocation0 [shape = 'u32[]', space=smem, size = 0x4, offset = 0x4, fixed_abs, tag = 'smem constant byte address 0x4 - core index']
  #allocation1 [shape = 'u32[144,128]{1,0:T(1,128)}', space=vmem, size = 0x12000, scoped, tag = 'internal scratch']
  #allocation2 [shape = 'f32[1,1]{1,0:T(1,128)S(1)}', space=vmem, size = 0x200, scoped, tag = 'scoped memory for tpu_custom_call.1']
  %s0 = inlined_call_operand.hbm [shape: bf16[16,128], index: 0, kind: input, shape index: {}]
  %s1 = inlined_call_operand.hbm [shape: bf16[128,512], index: 1, kind: input, shape index: {}]
  %s2 = inlined_call_operand.vmem [shape: f32[1,512], index: 2, kind: input, shape index: {}]
  %s3 = inlined_call_operand.hbm [shape: bf16[512,384], index: 3, kind: input, shape index: {}]
  %s4 = inlined_call_operand.hbm [shape: bf16[128,384], index: 4, kind: input, shape index: {}]
  %s5 = inlined_call_operand.vmem [shape: f32[1,384], index: 5, kind: input, shape index: {}]
  %s6 = inlined_call_operand.vmem [shape: f32[1,384], index: 6, kind: input, shape index: {}]
  %s7 = inlined_call_operand.<no memory space> [shape: f32[1,1], index: 7, kind: input, shape index: {}]
  %s8 = inlined_call_operand.vmem [shape: f32[16,1], index: 8, kind: output, shape index: {}]
  %s9 = sld [smem:[#allocation0]]
  $region58: #{tpu_custom_call.1} parent=0
    _
  %s11 = ssub.s32 1, %s9
  %s12 = scalar_select 0, %s11, %s9
  %v13 = vstv %s7
  %14 = vst [vmem:[#allocation2] sm:$0x1] %v13
  $region1: #{tpu_custom_call.1} parent=0
    #allocation3 [shape = 'u8[4096]{0}', space=vmem, size = 0x1000, scoped, tag = 'input window, operand 0, single buffered']
    #allocation4 [shape = 's32[1]{0}', space=sflag, size = 0x4, scoped, tag = 'scoped memory for tpu_custom_call.1']
    #allocation5 [shape = 'u8[131072]{0}', space=vmem, size = 0x20000, scoped, tag = 'input window, operand 1, single buffered']
    #allocation6 [shape = 's32[1]{0}', space=sflag, size = 0x4, scoped, tag = 'scoped memory for tpu_custom_call.1']
    #allocation7 [shape = 'u8[393216]{0}', space=vmem, size = 0x60000, scoped, tag = 'input window, operand 3, single buffered']
    #allocation8 [shape = 'u8[98304]{0}', space=vmem, size = 0x18000, scoped, tag = 'input window, operand 4, single buffered']
    #allocation9 [shape = 's32[1]{0}', space=sflag, size = 0x4, scoped, tag = 'scoped memory for tpu_custom_call.1']
    %15 = vsyncpa [#allocation4], 0
    %16 = vsyncpa [#allocation6], 0
    %17 = vsyncpa [#allocation9], 0
    // Predicated region
    $region2: #{tpu_custom_call.1} parent=1 // pred_check
      _
    $region3: #{tpu_custom_call.1} parent=1 // pred_check_branch
      %19 = sbr.rel (0) target = $region5
    $region4: #{tpu_custom_call.1} parent=1 // pred_region
      %s21 = ssub.s32 128, 128
      %22 = vsyncadd [#allocation4], %s21
      %s23 = sshll.u32 [#allocation3], 4
      %s24 = int_to_ptr.vmem [resolvable:$true] %s23
      %29 = dma.hbm_to_vmem [thread:$0]  %s0, 128, %s24, [#allocation4], 64, 64, 4
    $region5: #{tpu_custom_call.1} parent=1 // pred_fallthru
      _
    // Predicated region
    $region6: #{tpu_custom_call.1} parent=1 // pred_check
      _
    $region7: #{tpu_custom_call.1} parent=1 // pred_check_branch
      %31 = sbr.rel (0) target = $region9
    $region8: #{tpu_custom_call.1} parent=1 // pred_region
      %s33 = ssub.s32 4096, 4096
      %34 = vsyncadd [#allocation6], %s33
      %s35 = sshll.u32 [#allocation5], 4
      %s36 = int_to_ptr.vmem [resolvable:$true] %s35
      %41 = dma.hbm_to_vmem [thread:$0]  %s1, 4096, %s36, [#allocation6], 256, 256, 16
    $region9: #{tpu_custom_call.1} parent=1 // pred_fallthru
      _
    // Predicated region
    $region10: #{tpu_custom_call.1} parent=1 // pred_check
      _
    $region11: #{tpu_custom_call.1} parent=1 // pred_check_branch
      %43 = sbr.rel (0) target = $region13
    $region12: #{tpu_custom_call.1} parent=1 // pred_region
      _
    $region13: #{tpu_custom_call.1} parent=1 // pred_fallthru
      _
    // Predicated region
    $region14: #{tpu_custom_call.1} parent=1 // pred_check
      _
    $region15: #{tpu_custom_call.1} parent=1 // pred_check_branch
      %45 = sbr.rel (0) target = $region17
    $region16: #{tpu_custom_call.1} parent=1 // pred_region
      %s47 = ssub.s32 12288, 12288
      %48 = vsyncadd [#allocation6], %s47
      %s49 = sshll.u32 [#allocation7], 4
      %s50 = int_to_ptr.vmem [resolvable:$true] %s49
      %55 = dma.hbm_to_vmem [thread:$0]  %s3, 12288, %s50, [#allocation6], 192, 192, 12
    $region17: #{tpu_custom_call.1} parent=1 // pred_fallthru
      _
    // Predicated region
    $region18: #{tpu_custom_call.1} parent=1 // pred_check
      _
    $region19: #{tpu_custom_call.1} parent=1 // pred_check_branch
      %57 = sbr.rel (0) target = $region21
    $region20: #{tpu_custom_call.1} parent=1 // pred_region
      %s59 = ssub.s32 3072, 3072
      %60 = vsyncadd [#allocation9], %s59
      %s61 = sshll.u32 [#allocation8], 4
      %s62 = int_to_ptr.vmem [resolvable:$true] %s61
      %67 = dma.hbm_to_vmem [thread:$0]  %s4, 3072, %s62, [#allocation9], 192, 192, 12
    $region21: #{tpu_custom_call.1} parent=1 // pred_fallthru
      _
    // Predicated region
    $region22: #{tpu_custom_call.1} parent=1 // pred_check
      _
    $region23: #{tpu_custom_call.1} parent=1 // pred_check_branch
      %69 = sbr.rel (0) target = $region25
    $region24: #{tpu_custom_call.1} parent=1 // pred_region
      _
    $region25: #{tpu_custom_call.1} parent=1 // pred_fallthru
      _
    // Predicated region
    $region26: #{tpu_custom_call.1} parent=1 // pred_check
      _
    $region27: #{tpu_custom_call.1} parent=1 // pred_check_branch
      %71 = sbr.rel (0) target = $region29
    $region28: #{tpu_custom_call.1} parent=1 // pred_region
      _
    $region29: #{tpu_custom_call.1} parent=1 // pred_fallthru
      _
    // Predicated region
    $region30: #{tpu_custom_call.1} parent=1 // pred_check
      _
    $region31: #{tpu_custom_call.1} parent=1 // pred_check_branch
      %73 = sbr.rel (0) target = $region33
    $region32: #{tpu_custom_call.1} parent=1 // pred_region
      _
    $region33: #{tpu_custom_call.1} parent=1 // pred_fallthru
      _
    // Predicated region
    $region34: #{tpu_custom_call.1} parent=1 // pred_check
      _
    $region35: #{tpu_custom_call.1} parent=1 // pred_check_branch
      %75 = sbr.rel (0) target = $region37
    $region36: #{tpu_custom_call.1} parent=1 // pred_region
      %76 = dma.done [#allocation4], 128
    $region37: #{tpu_custom_call.1} parent=1 // pred_fallthru
      _
    // Predicated region
    $region38: #{tpu_custom_call.1} parent=1 // pred_check
      _
    $region39: #{tpu_custom_call.1} parent=1 // pred_check_branch
      %78 = sbr.rel (0) target = $region41
    $region40: #{tpu_custom_call.1} parent=1 // pred_region
      %79 = dma.done [#allocation6], 4096
    $region41: #{tpu_custom_call.1} parent=1 // pred_fallthru
      _
    // Predicated region
    $region42: #{tpu_custom_call.1} parent=1 // pred_check
      _
    $region43: #{tpu_custom_call.1} parent=1 // pred_check_branch
      %81 = sbr.rel (0) target = $region45
    $region44: #{tpu_custom_call.1} parent=1 // pred_region
      %82 = dma.done [#allocation6], 12288
    $region45: #{tpu_custom_call.1} parent=1 // pred_fallthru
      _
    // Predicated region
    $region46: #{tpu_custom_call.1} parent=1 // pred_check
      _
    $region47: #{tpu_custom_call.1} parent=1 // pred_check_branch
      %84 = sbr.rel (0) target = $region49
    $region48: #{tpu_custom_call.1} parent=1 // pred_region
      %85 = dma.done [#allocation9], 3072
    $region49: #{tpu_custom_call.1} parent=1 // pred_fallthru
      _
    %v87 = vld [vmem:[#allocation3] sm:$0xf]
    %v88 = vld [vmem:[#allocation3 + $0x4] sm:$0xf]
    %v89 = vld [vmem:[#allocation5] sm:$0xff]
    %v90 = vld [vmem:[#allocation5 + $0x8] sm:$0xff]
    %v91 = vld [vmem:[#allocation5 + $0x10] sm:$0xff]
    %v92 = vld [vmem:[#allocation5 + $0x18] sm:$0xff]
    %v93 = vld [vmem:[#allocation5 + $0x20] sm:$0xff]
    %v94 = vld [vmem:[#allocation5 + $0x28] sm:$0xff]
    %v95 = vld [vmem:[#allocation5 + $0x30] sm:$0xff]
    %v96 = vld [vmem:[#allocation5 + $0x38] sm:$0xff]
    %v97 = vld [vmem:[#allocation5 + $0x40] sm:$0xff]
    %v98 = vld [vmem:[#allocation5 + $0x48] sm:$0xff]
    %v99 = vld [vmem:[#allocation5 + $0x50] sm:$0xff]
    %v100 = vld [vmem:[#allocation5 + $0x58] sm:$0xff]
    %v101 = vld [vmem:[#allocation5 + $0x60] sm:$0xff]
    %v102 = vld [vmem:[#allocation5 + $0x68] sm:$0xff]
    %v103 = vld [vmem:[#allocation5 + $0x70] sm:$0xff]
    %v104 = vld [vmem:[#allocation5 + $0x78] sm:$0xff]
    %v105 = vld [vmem:[#allocation5 + $0x80] sm:$0xff]
    %v106 = vld [vmem:[#allocation5 + $0x88] sm:$0xff]
    %v107 = vld [vmem:[#allocation5 + $0x90] sm:$0xff]
    %v108 = vld [vmem:[#allocation5 + $0x98] sm:$0xff]
    %v109 = vld [vmem:[#allocation5 + $0xa0] sm:$0xff]
    %v110 = vld [vmem:[#allocation5 + $0xa8] sm:$0xff]
    %v111 = vld [vmem:[#allocation5 + $0xb0] sm:$0xff]
    %v112 = vld [vmem:[#allocation5 + $0xb8] sm:$0xff]
    %v113 = vld [vmem:[#allocation5 + $0xc0] sm:$0xff]
    %v114 = vld [vmem:[#allocation5 + $0xc8] sm:$0xff]
    %v115 = vld [vmem:[#allocation5 + $0xd0] sm:$0xff]
    %v116 = vld [vmem:[#allocation5 + $0xd8] sm:$0xff]
    %v117 = vld [vmem:[#allocation5 + $0xe0] sm:$0xff]
    %v118 = vld [vmem:[#allocation5 + $0xe8] sm:$0xff]
    %v119 = vld [vmem:[#allocation5 + $0xf0] sm:$0xff]
    %v120 = vld [vmem:[#allocation5 + $0xf8] sm:$0xff]
    %v121 = vld [vmem:[%s2] sm:$0xf]
    %v123 = vlaneseq
    %v124 = vshrl.u32 %v123, 7
    %v125 = vsub.s32 0, %v124
    %v126 = vrot.slane %v121, %v125
    %v127 = vlaneseq
    %v128 = vshrl.u32 %v127, 7
    %v129 = vsub.s32 1, %v128
    %v130 = vrot.slane %v121, %v129
    %v131 = vlaneseq
    %v132 = vshrl.u32 %v131, 7
    %v133 = vsub.s32 2, %v132
    %v134 = vrot.slane %v121, %v133
    %v135 = vlaneseq
    %v136 = vshrl.u32 %v135, 7
    %v137 = vsub.s32 3, %v136
    %v138 = vrot.slane %v121, %v137
    %v145 = vunpack.c.l.b16 %v87
    %v146 = vunpack.c.l.b16 %v88
    %v147 = vpack.c.b16 %v146, %v145
    %v181 = vunpack.c.l.b16 %v89
    %v182 = vunpack.c.h.b16 %v89
    %v183 = vunpack.c.l.b16 %v90
    %v184 = vunpack.c.h.b16 %v90
    %v185 = vunpack.c.l.b16 %v91
    %v186 = vunpack.c.h.b16 %v91
    %v187 = vunpack.c.l.b16 %v92
    %v188 = vunpack.c.h.b16 %v92
    %v189 = vunpack.c.l.b16 %v93
    %v190 = vunpack.c.h.b16 %v93
    %v191 = vunpack.c.l.b16 %v94
    %v192 = vunpack.c.h.b16 %v94
    %v193 = vunpack.c.l.b16 %v95
    %v194 = vunpack.c.h.b16 %v95
    %v195 = vunpack.c.l.b16 %v96
    %v196 = vunpack.c.h.b16 %v96
    %v197 = vunpack.c.l.b16 %v97
    %v198 = vunpack.c.h.b16 %v97
    %v199 = vunpack.c.l.b16 %v98
    %v200 = vunpack.c.h.b16 %v98
    %v201 = vunpack.c.l.b16 %v99
    %v202 = vunpack.c.h.b16 %v99
    %v203 = vunpack.c.l.b16 %v100
    %v204 = vunpack.c.h.b16 %v100
    %v205 = vunpack.c.l.b16 %v101
    %v206 = vunpack.c.h.b16 %v101
    %v207 = vunpack.c.l.b16 %v102
    %v208 = vunpack.c.h.b16 %v102
    %v209 = vunpack.c.l.b16 %v103
    %v210 = vunpack.c.h.b16 %v103
    %v211 = vunpack.c.l.b16 %v104
    %v212 = vunpack.c.h.b16 %v104
    %v213 = vunpack.c.l.b16 %v105
    %v214 = vunpack.c.h.b16 %v105
    %v215 = vunpack.c.l.b16 %v106
    %v216 = vunpack.c.h.b16 %v106
    %v217 = vunpack.c.l.b16 %v107
    %v218 = vunpack.c.h.b16 %v107
    %v219 = vunpack.c.l.b16 %v108
    %v220 = vunpack.c.h.b16 %v108
    %v221 = vunpack.c.l.b16 %v109
    %v222 = vunpack.c.h.b16 %v109
    %v223 = vunpack.c.l.b16 %v110
    %v224 = vunpack.c.h.b16 %v110
    %v225 = vunpack.c.l.b16 %v111
    %v226 = vunpack.c.h.b16 %v111
    %v227 = vunpack.c.l.b16 %v112
    %v228 = vunpack.c.h.b16 %v112
    %v229 = vunpack.c.l.b16 %v113
    %v230 = vunpack.c.h.b16 %v113
    %v231 = vunpack.c.l.b16 %v114
    %v232 = vunpack.c.h.b16 %v114
    %v233 = vunpack.c.l.b16 %v115
    %v234 = vunpack.c.h.b16 %v115
    %v235 = vunpack.c.l.b16 %v116
    %v236 = vunpack.c.h.b16 %v116
    %v237 = vunpack.c.l.b16 %v117
    %v238 = vunpack.c.h.b16 %v117
    %v239 = vunpack.c.l.b16 %v118
    %v240 = vunpack.c.h.b16 %v118
    %v241 = vunpack.c.l.b16 %v119
    %v242 = vunpack.c.h.b16 %v119
    %v243 = vunpack.c.l.b16 %v120
    %v244 = vunpack.c.h.b16 %v120
    %v245 = vpack.c.b16 %v185, %v181
    %v246 = vpack.c.b16 %v186, %v182
    %v247 = vpack.c.b16 %v187, %v183
    %v248 = vpack.c.b16 %v188, %v184
    %v249 = vpack.c.b16 %v193, %v189
    %v250 = vpack.c.b16 %v194, %v190
    %v251 = vpack.c.b16 %v195, %v191
    %v252 = vpack.c.b16 %v196, %v192
    %v253 = vpack.c.b16 %v201, %v197
    %v254 = vpack.c.b16 %v202, %v198
    %v255 = vpack.c.b16 %v203, %v199
    %v256 = vpack.c.b16 %v204, %v200
    %v257 = vpack.c.b16 %v209, %v205
    %v258 = vpack.c.b16 %v210, %v206
    %v259 = vpack.c.b16 %v211, %v207
    %v260 = vpack.c.b16 %v212, %v208
    %v261 = vpack.c.b16 %v217, %v213
    %v262 = vpack.c.b16 %v218, %v214
    %v263 = vpack.c.b16 %v219, %v215
    %v264 = vpack.c.b16 %v220, %v216
    %v265 = vpack.c.b16 %v225, %v221
    %v266 = vpack.c.b16 %v226, %v222
    %v267 = vpack.c.b16 %v227, %v223
    %v268 = vpack.c.b16 %v228, %v224
    %v269 = vpack.c.b16 %v233, %v229
    %v270 = vpack.c.b16 %v234, %v230
    %v271 = vpack.c.b16 %v235, %v231
    %v272 = vpack.c.b16 %v236, %v232
    %v273 = vpack.c.b16 %v241, %v237
    %v274 = vpack.c.b16 %v242, %v238
    %v275 = vpack.c.b16 %v243, %v239
    %v276 = vpack.c.b16 %v244, %v240
    %309 = vmatprep.subr.bf16.mxu0 %v246
    %310 = vmatpush1.bf16.msra.mxu0 %v245
    %311 = vmatprep.subr.bf16.mxu0 %v250
    %312 = vmatpush1.bf16.msra.mxu0 %v249
    %313 = vmatprep.subr.bf16.mxu0 %v254
    %314 = vmatpush1.bf16.msra.mxu0 %v253
    %315 = vmatprep.subr.bf16.mxu0 %v258
    %316 = vmatpush1.bf16.msra.mxu0 %v257
    %317 = vmatprep.subr.bf16.mxu0 %v262
    %318 = vmatpush1.bf16.msra.mxu0 %v261
    %319 = vmatprep.subr.bf16.mxu0 %v266
    %320 = vmatpush1.bf16.msra.mxu0 %v265
    %321 = vmatprep.subr.bf16.mxu0 %v270
    %322 = vmatpush1.bf16.msra.mxu0 %v269
    %323 = vmatprep.subr.bf16.mxu0 %v274
    %324 = vmatpush1.bf16.msra.mxu0 %v273
    %325 = vmatprep.subr.bf16.mxu0 0
    %326 = vmatpush1.bf16.msra.mxu0 0
    %327 = vmatprep.subr.bf16.mxu0 0
    %328 = vmatpush1.bf16.msra.mxu0 0
    %329 = vmatprep.subr.bf16.mxu0 0
    %330 = vmatpush1.bf16.msra.mxu0 0
    %331 = vmatprep.subr.bf16.mxu0 0
    %332 = vmatpush1.bf16.msra.mxu0 0
    %333 = vmatprep.subr.bf16.mxu0 0
    %334 = vmatpush1.bf16.msra.mxu0 0
    %335 = vmatprep.subr.bf16.mxu0 0
    %336 = vmatpush1.bf16.msra.mxu0 0
    %337 = vmatprep.subr.bf16.mxu0 0
    %338 = vmatpush1.bf16.msra.mxu0 0
    %339 = vmatprep.subr.bf16.mxu0 0
    %340 = vmatpush1.bf16.msra.mxu0 0
    %341 = vmatprep.mubr.bf16.mxu0 0
    %342 = vmatmul.mubr.bf16.gmra.mrb[0].mxu0 %v147
    %v343 = vpop.f32.mrb[0].mxu0
    %v344 = vadd.f32 %v126, %v343
    %v345 = vpop.f32.mrb[0].mxu0
    %v346 = vadd.f32 %v130, %v345
    %v347 = vpop.f32.mrb[0].mxu0
    %v348 = vadd.f32 %v126, %v347
    %v349 = vpop.f32.mrb[0].mxu0
    %v350 = vadd.f32 %v130, %v349
    %351 = vdwg.mxu0
    %352 = vmatprep.subr.bf16.mxu0 %v248
    %353 = vmatpush1.bf16.msra.mxu0 %v247
    %354 = vmatprep.subr.bf16.mxu0 %v252
    %355 = vmatpush1.bf16.msra.mxu0 %v251
    %356 = vmatprep.subr.bf16.mxu0 %v256
    %357 = vmatpush1.bf16.msra.mxu0 %v255
    %358 = vmatprep.subr.bf16.mxu0 %v260
    %359 = vmatpush1.bf16.msra.mxu0 %v259
    %360 = vmatprep.subr.bf16.mxu0 %v264
    %361 = vmatpush1.bf16.msra.mxu0 %v263
    %362 = vmatprep.subr.bf16.mxu0 %v268
    %363 = vmatpush1.bf16.msra.mxu0 %v267
    %364 = vmatprep.subr.bf16.mxu0 %v272
    %365 = vmatpush1.bf16.msra.mxu0 %v271
    %366 = vmatprep.subr.bf16.mxu0 %v276
    %367 = vmatpush1.bf16.msra.mxu0 %v275
    %368 = vmatprep.subr.bf16.mxu0 0
    %369 = vmatpush1.bf16.msra.mxu0 0
    %370 = vmatprep.subr.bf16.mxu0 0
    %371 = vmatpush1.bf16.msra.mxu0 0
    %372 = vmatprep.subr.bf16.mxu0 0
    %373 = vmatpush1.bf16.msra.mxu0 0
    %374 = vmatprep.subr.bf16.mxu0 0
    %375 = vmatpush1.bf16.msra.mxu0 0
    %376 = vmatprep.subr.bf16.mxu0 0
    %377 = vmatpush1.bf16.msra.mxu0 0
    %378 = vmatprep.subr.bf16.mxu0 0
    %379 = vmatpush1.bf16.msra.mxu0 0
    %380 = vmatprep.subr.bf16.mxu0 0
    %381 = vmatpush1.bf16.msra.mxu0 0
    %382 = vmatprep.subr.bf16.mxu0 0
    %383 = vmatpush1.bf16.msra.mxu0 0
    %384 = vmatprep.mubr.bf16.mxu0 0
    %385 = vmatmul.mubr.bf16.gmra.mrb[0].mxu0 %v147
    %v386 = vpop.f32.mrb[0].mxu0
    %v387 = vadd.f32 %v134, %v386
    %v388 = vpop.f32.mrb[0].mxu0
    %v389 = vadd.f32 %v138, %v388
    %v390 = vpop.f32.mrb[0].mxu0
    %v391 = vadd.f32 %v134, %v390
    %v392 = vpop.f32.mrb[0].mxu0
    %v393 = vadd.f32 %v138, %v392
    %394 = vdwg.mxu0
    %v395 = vmax.f32 %v344, 0.0
    %v396 = vmax.f32 %v346, 0.0
    %v397 = vmax.f32 %v387, 0.0
    %v398 = vmax.f32 %v389, 0.0
    %v399 = vmax.f32 %v348, 0.0
    %v400 = vmax.f32 %v350, 0.0
    %v401 = vmax.f32 %v391, 0.0
    %v402 = vmax.f32 %v393, 0.0
    %v403 = vpack.c.bf16 %v399, %v395
    %v404 = vpack.c.bf16 %v400, %v396
    %v405 = vpack.c.bf16 %v401, %v397
    %v406 = vpack.c.bf16 %v402, %v398
    %v407 = vld [vmem:[#allocation7] sm:$0xff]
    %v408 = vld [vmem:[#allocation7 + $0x8] sm:$0xf]
    %v409 = vld [vmem:[#allocation7 + $0xc] sm:$0xff]
    %v410 = vld [vmem:[#allocation7 + $0x14] sm:$0xf]
    %v411 = vld [vmem:[#allocation7 + $0x18] sm:$0xff]
    %v412 = vld [vmem:[#allocation7 + $0x20] sm:$0xf]
    %v413 = vld [vmem:[#allocation7 + $0x24] sm:$0xff]
    %v414 = vld [vmem:[#allocation7 + $0x2c] sm:$0xf]
    %v415 = vld [vmem:[#allocation7 + $0x30] sm:$0xff]
    %v416 = vld [vmem:[#allocation7 + $0x38] sm:$0xf]
    %v417 = vld [vmem:[#allocation7 + $0x3c] sm:$0xff]
    %v418 = vld [vmem:[#allocation7 + $0x44] sm:$0xf]
    %v419 = vld [vmem:[#allocation7 + $0x48] sm:$0xff]
    %v420 = vld [vmem:[#allocation7 + $0x50] sm:$0xf]
    %v421 = vld [vmem:[#allocation7 + $0x54] sm:$0xff]
    %v422 = vld [vmem:[#allocation7 + $0x5c] sm:$0xf]
    %v423 = vld [vmem:[#allocation7 + $0x60] sm:$0xff]
    %v424 = vld [vmem:[#allocation7 + $0x68] sm:$0xf]
    %v425 = vld [vmem:[#allocation7 + $0x6c] sm:$0xff]
    %v426 = vld [vmem:[#allocation7 + $0x74] sm:$0xf]
    %v427 = vld [vmem:[#allocation7 + $0x78] sm:$0xff]
    %v428 = vld [vmem:[#allocation7 + $0x80] sm:$0xf]
    %v429 = vld [vmem:[#allocation7 + $0x84] sm:$0xff]
    %v430 = vld [vmem:[#allocation7 + $0x8c] sm:$0xf]
    %v431 = vld [vmem:[#allocation7 + $0x90] sm:$0xff]
    %v432 = vld [vmem:[#allocation7 + $0x98] sm:$0xf]
    %v433 = vld [vmem:[#allocation7 + $0x9c] sm:$0xff]
    %v434 = vld [vmem:[#allocation7 + $0xa4] sm:$0xf]
    %v435 = vld [vmem:[#allocation7 + $0xa8] sm:$0xff]
    %v436 = vld [vmem:[#allocation7 + $0xb0] sm:$0xf]
    %v437 = vld [vmem:[#allocation7 + $0xb4] sm:$0xff]
    %v438 = vld [vmem:[#allocation7 + $0xbc] sm:$0xf]
    %v439 = vld [vmem:[#allocation7 + $0xc0] sm:$0xff]
    %v440 = vld [vmem:[#allocation7 + $0xc8] sm:$0xf]
    %v441 = vld [vmem:[#allocation7 + $0xcc] sm:$0xff]
    %v442 = vld [vmem:[#allocation7 + $0xd4] sm:$0xf]
    %v443 = vld [vmem:[#allocation7 + $0xd8] sm:$0xff]
    %v444 = vld [vmem:[#allocation7 + $0xe0] sm:$0xf]
    %v445 = vld [vmem:[#allocation7 + $0xe4] sm:$0xff]
    %v446 = vld [vmem:[#allocation7 + $0xec] sm:$0xf]
    %v447 = vld [vmem:[#allocation7 + $0xf0] sm:$0xff]
    %v448 = vld [vmem:[#allocation7 + $0xf8] sm:$0xf]
    %v449 = vld [vmem:[#allocation7 + $0xfc] sm:$0xff]
    %v450 = vld [vmem:[#allocation7 + $0x104] sm:$0xf]
    %v451 = vld [vmem:[#allocation7 + $0x108] sm:$0xff]
    %v452 = vld [vmem:[#allocation7 + $0x110] sm:$0xf]
    %v453 = vld [vmem:[#allocation7 + $0x114] sm:$0xff]
    %v454 = vld [vmem:[#allocation7 + $0x11c] sm:$0xf]
    %v455 = vld [vmem:[#allocation7 + $0x120] sm:$0xff]
    %v456 = vld [vmem:[#allocation7 + $0x128] sm:$0xf]
    %v457 = vld [vmem:[#allocation7 + $0x12c] sm:$0xff]
    %v458 = vld [vmem:[#allocation7 + $0x134] sm:$0xf]
    %v459 = vld [vmem:[#allocation7 + $0x138] sm:$0xff]
    %v460 = vld [vmem:[#allocation7 + $0x140] sm:$0xf]
    %v461 = vld [vmem:[#allocation7 + $0x144] sm:$0xff]
    %v462 = vld [vmem:[#allocation7 + $0x14c] sm:$0xf]
    %v463 = vld [vmem:[#allocation7 + $0x150] sm:$0xff]
    %v464 = vld [vmem:[#allocation7 + $0x158] sm:$0xf]
    %v465 = vld [vmem:[#allocation7 + $0x15c] sm:$0xff]
    %v466 = vld [vmem:[#allocation7 + $0x164] sm:$0xf]
    %v467 = vld [vmem:[#allocation7 + $0x168] sm:$0xff]
    %v468 = vld [vmem:[#allocation7 + $0x170] sm:$0xf]
    %v469 = vld [vmem:[#allocation7 + $0x174] sm:$0xff]
    %v470 = vld [vmem:[#allocation7 + $0x17c] sm:$0xf]
    %v471 = vld [vmem:[#allocation7 + $0x180] sm:$0xff]
    %v472 = vld [vmem:[#allocation7 + $0x188] sm:$0xf]
    %v473 = vld [vmem:[#allocation7 + $0x18c] sm:$0xff]
    %v474 = vld [vmem:[#allocation7 + $0x194] sm:$0xf]
    %v475 = vld [vmem:[#allocation7 + $0x198] sm:$0xff]
    %v476 = vld [vmem:[#allocation7 + $0x1a0] sm:$0xf]
    %v477 = vld [vmem:[#allocation7 + $0x1a4] sm:$0xff]
    %v478 = vld [vmem:[#allocation7 + $0x1ac] sm:$0xf]
    %v479 = vld [vmem:[#allocation7 + $0x1b0] sm:$0xff]
    %v480 = vld [vmem:[#allocation7 + $0x1b8] sm:$0xf]
    %v481 = vld [vmem:[#allocation7 + $0x1bc] sm:$0xff]
    %v482 = vld [vmem:[#allocation7 + $0x1c4] sm:$0xf]
    %v483 = vld [vmem:[#allocation7 + $0x1c8] sm:$0xff]
    %v484 = vld [vmem:[#allocation7 + $0x1d0] sm:$0xf]
    %v485 = vld [vmem:[#allocation7 + $0x1d4] sm:$0xff]
    %v486 = vld [vmem:[#allocation7 + $0x1dc] sm:$0xf]
    %v487 = vld [vmem:[#allocation7 + $0x1e0] sm:$0xff]
    %v488 = vld [vmem:[#allocation7 + $0x1e8] sm:$0xf]
    %v489 = vld [vmem:[#allocation7 + $0x1ec] sm:$0xff]
    %v490 = vld [vmem:[#allocation7 + $0x1f4] sm:$0xf]
    %v491 = vld [vmem:[#allocation7 + $0x1f8] sm:$0xff]
    %v492 = vld [vmem:[#allocation7 + $0x200] sm:$0xf]
    %v493 = vld [vmem:[#allocation7 + $0x204] sm:$0xff]
    %v494 = vld [vmem:[#allocation7 + $0x20c] sm:$0xf]
    %v495 = vld [vmem:[#allocation7 + $0x210] sm:$0xff]
    %v496 = vld [vmem:[#allocation7 + $0x218] sm:$0xf]
    %v497 = vld [vmem:[#allocation7 + $0x21c] sm:$0xff]
    %v498 = vld [vmem:[#allocation7 + $0x224] sm:$0xf]
    %v499 = vld [vmem:[#allocation7 + $0x228] sm:$0xff]
    %v500 = vld [vmem:[#allocation7 + $0x230] sm:$0xf]
    %v501 = vld [vmem:[#allocation7 + $0x234] sm:$0xff]
    %v502 = vld [vmem:[#allocation7 + $0x23c] sm:$0xf]
    %v503 = vld [vmem:[#allocation7 + $0x240] sm:$0xff]
    %v504 = vld [vmem:[#allocation7 + $0x248] sm:$0xf]
    %v505 = vld [vmem:[#allocation7 + $0x24c] sm:$0xff]
    %v506 = vld [vmem:[#allocation7 + $0x254] sm:$0xf]
    %v507 = vld [vmem:[#allocation7 + $0x258] sm:$0xff]
    %v508 = vld [vmem:[#allocation7 + $0x260] sm:$0xf]
    %v509 = vld [vmem:[#allocation7 + $0x264] sm:$0xff]
    %v510 = vld [vmem:[#allocation7 + $0x26c] sm:$0xf]
    %v511 = vld [vmem:[#allocation7 + $0x270] sm:$0xff]
    %v512 = vld [vmem:[#allocation7 + $0x278] sm:$0xf]
    %v513 = vld [vmem:[#allocation7 + $0x27c] sm:$0xff]
    %v514 = vld [vmem:[#allocation7 + $0x284] sm:$0xf]
    %v515 = vld [vmem:[#allocation7 + $0x288] sm:$0xff]
    %v516 = vld [vmem:[#allocation7 + $0x290] sm:$0xf]
    %v517 = vld [vmem:[#allocation7 + $0x294] sm:$0xff]
    %v518 = vld [vmem:[#allocation7 + $0x29c] sm:$0xf]
    %v519 = vld [vmem:[#allocation7 + $0x2a0] sm:$0xff]
    %v520 = vld [vmem:[#allocation7 + $0x2a8] sm:$0xf]
    %v521 = vld [vmem:[#allocation7 + $0x2ac] sm:$0xff]
    %v522 = vld [vmem:[#allocation7 + $0x2b4] sm:$0xf]
    %v523 = vld [vmem:[#allocation7 + $0x2b8] sm:$0xff]
    %v524 = vld [vmem:[#allocation7 + $0x2c0] sm:$0xf]
    %v525 = vld [vmem:[#allocation7 + $0x2c4] sm:$0xff]
    %v526 = vld [vmem:[#allocation7 + $0x2cc] sm:$0xf]
    %v527 = vld [vmem:[#allocation7 + $0x2d0] sm:$0xff]
    %v528 = vld [vmem:[#allocation7 + $0x2d8] sm:$0xf]
    %v529 = vld [vmem:[#allocation7 + $0x2dc] sm:$0xff]
    %v530 = vld [vmem:[#allocation7 + $0x2e4] sm:$0xf]
    %v531 = vld [vmem:[#allocation7 + $0x2e8] sm:$0xff]
    %v532 = vld [vmem:[#allocation7 + $0x2f0] sm:$0xf]
    %v533 = vld [vmem:[#allocation7 + $0x2f4] sm:$0xff]
    %v534 = vld [vmem:[#allocation7 + $0x2fc] sm:$0xf]
    %v535 = vld [vmem:[#allocation8] sm:$0xff]
    %v536 = vld [vmem:[#allocation8 + $0x8] sm:$0xf]
    %v537 = vld [vmem:[#allocation8 + $0xc] sm:$0xff]
    %v538 = vld [vmem:[#allocation8 + $0x14] sm:$0xf]
    %v539 = vld [vmem:[#allocation8 + $0x18] sm:$0xff]
    %v540 = vld [vmem:[#allocation8 + $0x20] sm:$0xf]
    %v541 = vld [vmem:[#allocation8 + $0x24] sm:$0xff]
    %v542 = vld [vmem:[#allocation8 + $0x2c] sm:$0xf]
    %v543 = vld [vmem:[#allocation8 + $0x30] sm:$0xff]
    %v544 = vld [vmem:[#allocation8 + $0x38] sm:$0xf]
    %v545 = vld [vmem:[#allocation8 + $0x3c] sm:$0xff]
    %v546 = vld [vmem:[#allocation8 + $0x44] sm:$0xf]
    %v547 = vld [vmem:[#allocation8 + $0x48] sm:$0xff]
    %v548 = vld [vmem:[#allocation8 + $0x50] sm:$0xf]
    %v549 = vld [vmem:[#allocation8 + $0x54] sm:$0xff]
    %v550 = vld [vmem:[#allocation8 + $0x5c] sm:$0xf]
    %v551 = vld [vmem:[#allocation8 + $0x60] sm:$0xff]
    %v552 = vld [vmem:[#allocation8 + $0x68] sm:$0xf]
    %v553 = vld [vmem:[#allocation8 + $0x6c] sm:$0xff]
    %v554 = vld [vmem:[#allocation8 + $0x74] sm:$0xf]
    %v555 = vld [vmem:[#allocation8 + $0x78] sm:$0xff]
    %v556 = vld [vmem:[#allocation8 + $0x80] sm:$0xf]
    %v557 = vld [vmem:[#allocation8 + $0x84] sm:$0xff]
    %v558 = vld [vmem:[#allocation8 + $0x8c] sm:$0xf]
    %v559 = vld [vmem:[#allocation8 + $0x90] sm:$0xff]
    %v560 = vld [vmem:[#allocation8 + $0x98] sm:$0xf]
    %v561 = vld [vmem:[#allocation8 + $0x9c] sm:$0xff]
    %v562 = vld [vmem:[#allocation8 + $0xa4] sm:$0xf]
    %v563 = vld [vmem:[#allocation8 + $0xa8] sm:$0xff]
    %v564 = vld [vmem:[#allocation8 + $0xb0] sm:$0xf]
    %v565 = vld [vmem:[#allocation8 + $0xb4] sm:$0xff]
    %v566 = vld [vmem:[#allocation8 + $0xbc] sm:$0xf]
    %v599 = vunpack.c.l.b16 %v535
    %v600 = vunpack.c.h.b16 %v535
    %v601 = vunpack.c.l.b16 %v536
    %v602 = vunpack.c.l.b16 %v537
    %v603 = vunpack.c.h.b16 %v537
    %v604 = vunpack.c.l.b16 %v538
    %v605 = vunpack.c.l.b16 %v539
    %v606 = vunpack.c.h.b16 %v539
    %v607 = vunpack.c.l.b16 %v540
    %v608 = vunpack.c.l.b16 %v541
    %v609 = vunpack.c.h.b16 %v541
    %v610 = vunpack.c.l.b16 %v542
    %v611 = vunpack.c.l.b16 %v543
    %v612 = vunpack.c.h.b16 %v543
    %v613 = vunpack.c.l.b16 %v544
    %v614 = vunpack.c.l.b16 %v545
    %v615 = vunpack.c.h.b16 %v545
    %v616 = vunpack.c.l.b16 %v546
    %v617 = vunpack.c.l.b16 %v547
    %v618 = vunpack.c.h.b16 %v547
    %v619 = vunpack.c.l.b16 %v548
    %v620 = vunpack.c.l.b16 %v549
    %v621 = vunpack.c.h.b16 %v549
    %v622 = vunpack.c.l.b16 %v550
    %v623 = vunpack.c.l.b16 %v551
    %v624 = vunpack.c.h.b16 %v551
    %v625 = vunpack.c.l.b16 %v552
    %v626 = vunpack.c.l.b16 %v553
    %v627 = vunpack.c.h.b16 %v553
    %v628 = vunpack.c.l.b16 %v554
    %v629 = vunpack.c.l.b16 %v555
    %v630 = vunpack.c.h.b16 %v555
    %v631 = vunpack.c.l.b16 %v556
    %v632 = vunpack.c.l.b16 %v557
    %v633 = vunpack.c.h.b16 %v557
    %v634 = vunpack.c.l.b16 %v558
    %v635 = vunpack.c.l.b16 %v559
    %v636 = vunpack.c.h.b16 %v559
    %v637 = vunpack.c.l.b16 %v560
    %v638 = vunpack.c.l.b16 %v561
    %v639 = vunpack.c.h.b16 %v561
    %v640 = vunpack.c.l.b16 %v562
    %v641 = vunpack.c.l.b16 %v563
    %v642 = vunpack.c.h.b16 %v563
    %v643 = vunpack.c.l.b16 %v564
    %v644 = vunpack.c.l.b16 %v565
    %v645 = vunpack.c.h.b16 %v565
    %v646 = vunpack.c.l.b16 %v566
    %v647 = vpack.c.b16 %v602, %v599
    %v648 = vpack.c.b16 %v603, %v600
    %v649 = vpack.c.b16 %v604, %v601
    %v650 = vpack.c.b16 %v608, %v605
    %v651 = vpack.c.b16 %v609, %v606
    %v652 = vpack.c.b16 %v610, %v607
    %v653 = vpack.c.b16 %v614, %v611
    %v654 = vpack.c.b16 %v615, %v612
    %v655 = vpack.c.b16 %v616, %v613
    %v656 = vpack.c.b16 %v620, %v617
    %v657 = vpack.c.b16 %v621, %v618
    %v658 = vpack.c.b16 %v622, %v619
    %v659 = vpack.c.b16 %v626, %v623
    %v660 = vpack.c.b16 %v627, %v624
    %v661 = vpack.c.b16 %v628, %v625
    %v662 = vpack.c.b16 %v632, %v629
    %v663 = vpack.c.b16 %v633, %v630
    %v664 = vpack.c.b16 %v634, %v631
    %v665 = vpack.c.b16 %v638, %v635
    %v666 = vpack.c.b16 %v639, %v636
    %v667 = vpack.c.b16 %v640, %v637
    %v668 = vpack.c.b16 %v644, %v641
    %v669 = vpack.c.b16 %v645, %v642
    %v670 = vpack.c.b16 %v646, %v643
    %695 = vmatprep.subr.bf16.mxu0 %v648
    %696 = vmatpush1.bf16.msra.mxu0 %v647
    %697 = vmatprep.subr.bf16.mxu0 %v651
    %698 = vmatpush1.bf16.msra.mxu0 %v650
    %699 = vmatprep.subr.bf16.mxu0 %v654
    %700 = vmatpush1.bf16.msra.mxu0 %v653
    %701 = vmatprep.subr.bf16.mxu0 %v657
    %702 = vmatpush1.bf16.msra.mxu0 %v656
    %703 = vmatprep.subr.bf16.mxu0 %v660
    %704 = vmatpush1.bf16.msra.mxu0 %v659
    %705 = vmatprep.subr.bf16.mxu0 %v663
    %706 = vmatpush1.bf16.msra.mxu0 %v662
    %707 = vmatprep.subr.bf16.mxu0 %v666
    %708 = vmatpush1.bf16.msra.mxu0 %v665
    %709 = vmatprep.subr.bf16.mxu0 %v669
    %710 = vmatpush1.bf16.msra.mxu0 %v668
    %711 = vmatprep.subr.bf16.mxu0 0
    %712 = vmatpush1.bf16.msra.mxu0 0
    %713 = vmatprep.subr.bf16.mxu0 0
    %714 = vmatpush1.bf16.msra.mxu0 0
    %715 = vmatprep.subr.bf16.mxu0 0
    %716 = vmatpush1.bf16.msra.mxu0 0
    %717 = vmatprep.subr.bf16.mxu0 0
    %718 = vmatpush1.bf16.msra.mxu0 0
    %719 = vmatprep.subr.bf16.mxu0 0
    %720 = vmatpush1.bf16.msra.mxu0 0
    %721 = vmatprep.subr.bf16.mxu0 0
    %722 = vmatpush1.bf16.msra.mxu0 0
    %723 = vmatprep.subr.bf16.mxu0 0
    %724 = vmatpush1.bf16.msra.mxu0 0
    %725 = vmatprep.subr.bf16.mxu0 0
    %726 = vmatpush1.bf16.msra.mxu0 0
    %727 = vmatprep.mubr.bf16.mxu0 0
    %728 = vmatmul.mubr.bf16.gmra.mrb[0].mxu0 %v147
    %v729 = vpop.f32.mrb[0].mxu0
    %v730 = vadd.f32 0.0, %v729
    %v731 = vpop.f32.mrb[0].mxu0
    %v732 = vadd.f32 0.0, %v731
    %v733 = vpop.f32.mrb[0].mxu0
    %v734 = vadd.f32 0.0, %v733
    %v735 = vpop.f32.mrb[0].mxu0
    %v736 = vadd.f32 0.0, %v735
    %737 = vdwg.mxu0
    %738 = vmatprep.subr.bf16.mxu0 0
    %739 = vmatpush1.bf16.msra.mxu0 %v649
    %740 = vmatprep.subr.bf16.mxu0 0
    %741 = vmatpush1.bf16.msra.mxu0 %v652
    %742 = vmatprep.subr.bf16.mxu0 0
    %743 = vmatpush1.bf16.msra.mxu0 %v655
    %744 = vmatprep.subr.bf16.mxu0 0
    %745 = vmatpush1.bf16.msra.mxu0 %v658
    %746 = vmatprep.subr.bf16.mxu0 0
    %747 = vmatpush1.bf16.msra.mxu0 %v661
    %748 = vmatprep.subr.bf16.mxu0 0
    %749 = vmatpush1.bf16.msra.mxu0 %v664
    %750 = vmatprep.subr.bf16.mxu0 0
    %751 = vmatpush1.bf16.msra.mxu0 %v667
    %752 = vmatprep.subr.bf16.mxu0 0
    %753 = vmatpush1.bf16.msra.mxu0 %v670
    %754 = vmatprep.subr.bf16.mxu0 0
    %755 = vmatpush1.bf16.msra.mxu0 0
    %756 = vmatprep.subr.bf16.mxu0 0
    %757 = vmatpush1.bf16.msra.mxu0 0
    %758 = vmatprep.subr.bf16.mxu0 0
    %759 = vmatpush1.bf16.msra.mxu0 0
    %760 = vmatprep.subr.bf16.mxu0 0
    %761 = vmatpush1.bf16.msra.mxu0 0
    %762 = vmatprep.subr.bf16.mxu0 0
    %763 = vmatpush1.bf16.msra.mxu0 0
    %764 = vmatprep.subr.bf16.mxu0 0
    %765 = vmatpush1.bf16.msra.mxu0 0
    %766 = vmatprep.subr.bf16.mxu0 0
    %767 = vmatpush1.bf16.msra.mxu0 0
    %768 = vmatprep.subr.bf16.mxu0 0
    %769 = vmatpush1.bf16.msra.mxu0 0
    %770 = vmatprep.mubr.bf16.mxu0 0
    %771 = vmatmul.mubr.bf16.gmra.mrb[0].mxu0 %v147
    %v772 = vpop.f32.mrb[0].mxu0
    %v773 = vadd.f32 0.0, %v772
    %v774 = vpop.f32.mrb[0].mxu0
    %v775 = vpop.f32.mrb[0].mxu0
    %v776 = vadd.f32 0.0, %v775
    %v777 = vpop.f32.mrb[0].mxu0
    %778 = vdwg.mxu0
    %v907 = vunpack.c.l.b16 %v407
    %v908 = vunpack.c.h.b16 %v407
    %v909 = vunpack.c.l.b16 %v408
    %v910 = vunpack.c.l.b16 %v409
    %v911 = vunpack.c.h.b16 %v409
    %v912 = vunpack.c.l.b16 %v410
    %v913 = vunpack.c.l.b16 %v411
    %v914 = vunpack.c.h.b16 %v411
    %v915 = vunpack.c.l.b16 %v412
    %v916 = vunpack.c.l.b16 %v413
    %v917 = vunpack.c.h.b16 %v413
    %v918 = vunpack.c.l.b16 %v414
    %v919 = vunpack.c.l.b16 %v415
    %v920 = vunpack.c.h.b16 %v415
    %v921 = vunpack.c.l.b16 %v416
    %v922 = vunpack.c.l.b16 %v417
    %v923 = vunpack.c.h.b16 %v417
    %v924 = vunpack.c.l.b16 %v418
    %v925 = vunpack.c.l.b16 %v419
    %v926 = vunpack.c.h.b16 %v419
    %v927 = vunpack.c.l.b16 %v420
    %v928 = vunpack.c.l.b16 %v421
    %v929 = vunpack.c.h.b16 %v421
    %v930 = vunpack.c.l.b16 %v422
    %v931 = vunpack.c.l.b16 %v423
    %v932 = vunpack.c.h.b16 %v423
    %v933 = vunpack.c.l.b16 %v424
    %v934 = vunpack.c.l.b16 %v425
    %v935 = vunpack.c.h.b16 %v425
    %v936 = vunpack.c.l.b16 %v426
    %v937 = vunpack.c.l.b16 %v427
    %v938 = vunpack.c.h.b16 %v427
    %v939 = vunpack.c.l.b16 %v428
    %v940 = vunpack.c.l.b16 %v429
    %v941 = vunpack.c.h.b16 %v429
    %v942 = vunpack.c.l.b16 %v430
    %v943 = vunpack.c.l.b16 %v431
    %v944 = vunpack.c.h.b16 %v431
    %v945 = vunpack.c.l.b16 %v432
    %v946 = vunpack.c.l.b16 %v433
    %v947 = vunpack.c.h.b16 %v433
    %v948 = vunpack.c.l.b16 %v434
    %v949 = vunpack.c.l.b16 %v435
    %v950 = vunpack.c.h.b16 %v435
    %v951 = vunpack.c.l.b16 %v436
    %v952 = vunpack.c.l.b16 %v437
    %v953 = vunpack.c.h.b16 %v437
    %v954 = vunpack.c.l.b16 %v438
    %v955 = vunpack.c.l.b16 %v439
    %v956 = vunpack.c.h.b16 %v439
    %v957 = vunpack.c.l.b16 %v440
    %v958 = vunpack.c.l.b16 %v441
    %v959 = vunpack.c.h.b16 %v441
    %v960 = vunpack.c.l.b16 %v442
    %v961 = vunpack.c.l.b16 %v443
    %v962 = vunpack.c.h.b16 %v443
    %v963 = vunpack.c.l.b16 %v444
    %v964 = vunpack.c.l.b16 %v445
    %v965 = vunpack.c.h.b16 %v445
    %v966 = vunpack.c.l.b16 %v446
    %v967 = vunpack.c.l.b16 %v447
    %v968 = vunpack.c.h.b16 %v447
    %v969 = vunpack.c.l.b16 %v448
    %v970 = vunpack.c.l.b16 %v449
    %v971 = vunpack.c.h.b16 %v449
    %v972 = vunpack.c.l.b16 %v450
    %v973 = vunpack.c.l.b16 %v451
    %v974 = vunpack.c.h.b16 %v451
    %v975 = vunpack.c.l.b16 %v452
    %v976 = vunpack.c.l.b16 %v453
    %v977 = vunpack.c.h.b16 %v453
    %v978 = vunpack.c.l.b16 %v454
    %v979 = vunpack.c.l.b16 %v455
    %v980 = vunpack.c.h.b16 %v455
    %v981 = vunpack.c.l.b16 %v456
    %v982 = vunpack.c.l.b16 %v457
    %v983 = vunpack.c.h.b16 %v457
    %v984 = vunpack.c.l.b16 %v458
    %v985 = vunpack.c.l.b16 %v459
    %v986 = vunpack.c.h.b16 %v459
    %v987 = vunpack.c.l.b16 %v460
    %v988 = vunpack.c.l.b16 %v461
    %v989 = vunpack.c.h.b16 %v461
    %v990 = vunpack.c.l.b16 %v462
    %v991 = vunpack.c.l.b16 %v463
    %v992 = vunpack.c.h.b16 %v463
    %v993 = vunpack.c.l.b16 %v464
    %v994 = vunpack.c.l.b16 %v465
    %v995 = vunpack.c.h.b16 %v465
    %v996 = vunpack.c.l.b16 %v466
    %v997 = vunpack.c.l.b16 %v467
    %v998 = vunpack.c.h.b16 %v467
    %v999 = vunpack.c.l.b16 %v468
    %v1000 = vunpack.c.l.b16 %v469
    %v1001 = vunpack.c.h.b16 %v469
    %v1002 = vunpack.c.l.b16 %v470
    %v1003 = vunpack.c.l.b16 %v471
    %v1004 = vunpack.c.h.b16 %v471
    %v1005 = vunpack.c.l.b16 %v472
    %v1006 = vunpack.c.l.b16 %v473
    %v1007 = vunpack.c.h.b16 %v473
    %v1008 = vunpack.c.l.b16 %v474
    %v1009 = vunpack.c.l.b16 %v475
    %v1010 = vunpack.c.h.b16 %v475
    %v1011 = vunpack.c.l.b16 %v476
    %v1012 = vunpack.c.l.b16 %v477
    %v1013 = vunpack.c.h.b16 %v477
    %v1014 = vunpack.c.l.b16 %v478
    %v1015 = vunpack.c.l.b16 %v479
    %v1016 = vunpack.c.h.b16 %v479
    %v1017 = vunpack.c.l.b16 %v480
    %v1018 = vunpack.c.l.b16 %v481
    %v1019 = vunpack.c.h.b16 %v481
    %v1020 = vunpack.c.l.b16 %v482
    %v1021 = vunpack.c.l.b16 %v483
    %v1022 = vunpack.c.h.b16 %v483
    %v1023 = vunpack.c.l.b16 %v484
    %v1024 = vunpack.c.l.b16 %v485
    %v1025 = vunpack.c.h.b16 %v485
    %v1026 = vunpack.c.l.b16 %v486
    %v1027 = vunpack.c.l.b16 %v487
    %v1028 = vunpack.c.h.b16 %v487
    %v1029 = vunpack.c.l.b16 %v488
    %v1030 = vunpack.c.l.b16 %v489
    %v1031 = vunpack.c.h.b16 %v489
    %v1032 = vunpack.c.l.b16 %v490
    %v1033 = vunpack.c.l.b16 %v491
    %v1034 = vunpack.c.h.b16 %v491
    %v1035 = vunpack.c.l.b16 %v492
    %v1036 = vunpack.c.l.b16 %v493
    %v1037 = vunpack.c.h.b16 %v493
    %v1038 = vunpack.c.l.b16 %v494
    %v1039 = vunpack.c.l.b16 %v495
    %v1040 = vunpack.c.h.b16 %v495
    %v1041 = vunpack.c.l.b16 %v496
    %v1042 = vunpack.c.l.b16 %v497
    %v1043 = vunpack.c.h.b16 %v497
    %v1044 = vunpack.c.l.b16 %v498
    %v1045 = vunpack.c.l.b16 %v499
    %v1046 = vunpack.c.h.b16 %v499
    %v1047 = vunpack.c.l.b16 %v500
    %v1048 = vunpack.c.l.b16 %v501
    %v1049 = vunpack.c.h.b16 %v501
    %v1050 = vunpack.c.l.b16 %v502
    %v1051 = vunpack.c.l.b16 %v503
    %v1052 = vunpack.c.h.b16 %v503
    %v1053 = vunpack.c.l.b16 %v504
    %v1054 = vunpack.c.l.b16 %v505
    %v1055 = vunpack.c.h.b16 %v505
    %v1056 = vunpack.c.l.b16 %v506
    %v1057 = vunpack.c.l.b16 %v507
    %v1058 = vunpack.c.h.b16 %v507
    %v1059 = vunpack.c.l.b16 %v508
    %v1060 = vunpack.c.l.b16 %v509
    %v1061 = vunpack.c.h.b16 %v509
    %v1062 = vunpack.c.l.b16 %v510
    %v1063 = vunpack.c.l.b16 %v511
    %v1064 = vunpack.c.h.b16 %v511
    %v1065 = vunpack.c.l.b16 %v512
    %v1066 = vunpack.c.l.b16 %v513
    %v1067 = vunpack.c.h.b16 %v513
    %v1068 = vunpack.c.l.b16 %v514
    %v1069 = vunpack.c.l.b16 %v515
    %v1070 = vunpack.c.h.b16 %v515
    %v1071 = vunpack.c.l.b16 %v516
    %v1072 = vunpack.c.l.b16 %v517
    %v1073 = vunpack.c.h.b16 %v517
    %v1074 = vunpack.c.l.b16 %v518
    %v1075 = vunpack.c.l.b16 %v519
    %v1076 = vunpack.c.h.b16 %v519
    %v1077 = vunpack.c.l.b16 %v520
    %v1078 = vunpack.c.l.b16 %v521
    %v1079 = vunpack.c.h.b16 %v521
    %v1080 = vunpack.c.l.b16 %v522
    %v1081 = vunpack.c.l.b16 %v523
    %v1082 = vunpack.c.h.b16 %v523
    %v1083 = vunpack.c.l.b16 %v524
    %v1084 = vunpack.c.l.b16 %v525
    %v1085 = vunpack.c.h.b16 %v525
    %v1086 = vunpack.c.l.b16 %v526
    %v1087 = vunpack.c.l.b16 %v527
    %v1088 = vunpack.c.h.b16 %v527
    %v1089 = vunpack.c.l.b16 %v528
    %v1090 = vunpack.c.l.b16 %v529
    %v1091 = vunpack.c.h.b16 %v529
    %v1092 = vunpack.c.l.b16 %v530
    %v1093 = vunpack.c.l.b16 %v531
    %v1094 = vunpack.c.h.b16 %v531
    %v1095 = vunpack.c.l.b16 %v532
    %v1096 = vunpack.c.l.b16 %v533
    %v1097 = vunpack.c.h.b16 %v533
    %v1098 = vunpack.c.l.b16 %v534
    %v1099 = vpack.c.b16 %v910, %v907
    %v1100 = vpack.c.b16 %v911, %v908
    %v1101 = vpack.c.b16 %v912, %v909
    %v1102 = vpack.c.b16 %v916, %v913
    %v1103 = vpack.c.b16 %v917, %v914
    %v1104 = vpack.c.b16 %v918, %v915
    %v1105 = vpack.c.b16 %v922, %v919
    %v1106 = vpack.c.b16 %v923, %v920
    %v1107 = vpack.c.b16 %v924, %v921
    %v1108 = vpack.c.b16 %v928, %v925
    %v1109 = vpack.c.b16 %v929, %v926
    %v1110 = vpack.c.b16 %v930, %v927
    %v1111 = vpack.c.b16 %v934, %v931
    %v1112 = vpack.c.b16 %v935, %v932
    %v1113 = vpack.c.b16 %v936, %v933
    %v1114 = vpack.c.b16 %v940, %v937
    %v1115 = vpack.c.b16 %v941, %v938
    %v1116 = vpack.c.b16 %v942, %v939
    %v1117 = vpack.c.b16 %v946, %v943
    %v1118 = vpack.c.b16 %v947, %v944
    %v1119 = vpack.c.b16 %v948, %v945
    %v1120 = vpack.c.b16 %v952, %v949
    %v1121 = vpack.c.b16 %v953, %v950
    %v1122 = vpack.c.b16 %v954, %v951
    %v1123 = vpack.c.b16 %v958, %v955
    %v1124 = vpack.c.b16 %v959, %v956
    %v1125 = vpack.c.b16 %v960, %v957
    %v1126 = vpack.c.b16 %v964, %v961
    %v1127 = vpack.c.b16 %v965, %v962
    %v1128 = vpack.c.b16 %v966, %v963
    %v1129 = vpack.c.b16 %v970, %v967
    %v1130 = vpack.c.b16 %v971, %v968
    %v1131 = vpack.c.b16 %v972, %v969
    %v1132 = vpack.c.b16 %v976, %v973
    %v1133 = vpack.c.b16 %v977, %v974
    %v1134 = vpack.c.b16 %v978, %v975
    %v1135 = vpack.c.b16 %v982, %v979
    %v1136 = vpack.c.b16 %v983, %v980
    %v1137 = vpack.c.b16 %v984, %v981
    %v1138 = vpack.c.b16 %v988, %v985
    %v1139 = vpack.c.b16 %v989, %v986
    %v1140 = vpack.c.b16 %v990, %v987
    %v1141 = vpack.c.b16 %v994, %v991
    %v1142 = vpack.c.b16 %v995, %v992
    %v1143 = vpack.c.b16 %v996, %v993
    %v1144 = vpack.c.b16 %v1000, %v997
    %v1145 = vpack.c.b16 %v1001, %v998
    %v1146 = vpack.c.b16 %v1002, %v999
    %v1147 = vpack.c.b16 %v1006, %v1003
    %v1148 = vpack.c.b16 %v1007, %v1004
    %v1149 = vpack.c.b16 %v1008, %v1005
    %v1150 = vpack.c.b16 %v1012, %v1009
    %v1151 = vpack.c.b16 %v1013, %v1010
    %v1152 = vpack.c.b16 %v1014, %v1011
    %v1153 = vpack.c.b16 %v1018, %v1015
    %v1154 = vpack.c.b16 %v1019, %v1016
    %v1155 = vpack.c.b16 %v1020, %v1017
    %v1156 = vpack.c.b16 %v1024, %v1021
    %v1157 = vpack.c.b16 %v1025, %v1022
    %v1158 = vpack.c.b16 %v1026, %v1023
    %v1159 = vpack.c.b16 %v1030, %v1027
    %v1160 = vpack.c.b16 %v1031, %v1028
    %v1161 = vpack.c.b16 %v1032, %v1029
    %v1162 = vpack.c.b16 %v1036, %v1033
    %v1163 = vpack.c.b16 %v1037, %v1034
    %v1164 = vpack.c.b16 %v1038, %v1035
    %v1165 = vpack.c.b16 %v1042, %v1039
    %v1166 = vpack.c.b16 %v1043, %v1040
    %v1167 = vpack.c.b16 %v1044, %v1041
    %v1168 = vpack.c.b16 %v1048, %v1045
    %v1169 = vpack.c.b16 %v1049, %v1046
    %v1170 = vpack.c.b16 %v1050, %v1047
    %v1171 = vpack.c.b16 %v1054, %v1051
    %v1172 = vpack.c.b16 %v1055, %v1052
    %v1173 = vpack.c.b16 %v1056, %v1053
    %v1174 = vpack.c.b16 %v1060, %v1057
    %v1175 = vpack.c.b16 %v1061, %v1058
    %v1176 = vpack.c.b16 %v1062, %v1059
    %v1177 = vpack.c.b16 %v1066, %v1063
    %v1178 = vpack.c.b16 %v1067, %v1064
    %v1179 = vpack.c.b16 %v1068, %v1065
    %v1180 = vpack.c.b16 %v1072, %v1069
    %v1181 = vpack.c.b16 %v1073, %v1070
    %v1182 = vpack.c.b16 %v1074, %v1071
    %v1183 = vpack.c.b16 %v1078, %v1075
    %v1184 = vpack.c.b16 %v1079, %v1076
    %v1185 = vpack.c.b16 %v1080, %v1077
    %v1186 = vpack.c.b16 %v1084, %v1081
    %v1187 = vpack.c.b16 %v1085, %v1082
    %v1188 = vpack.c.b16 %v1086, %v1083
    %v1189 = vpack.c.b16 %v1090, %v1087
    %v1190 = vpack.c.b16 %v1091, %v1088
    %v1191 = vpack.c.b16 %v1092, %v1089
    %v1192 = vpack.c.b16 %v1096, %v1093
    %v1193 = vpack.c.b16 %v1097, %v1094
    %v1194 = vpack.c.b16 %v1098, %v1095
    %1291 = vmatprep.subr.bf16.mxu0 %v1100
    %1292 = vmatpush1.bf16.msra.mxu0 %v1099
    %1293 = vmatprep.subr.bf16.mxu0 %v1103
    %1294 = vmatpush1.bf16.msra.mxu0 %v1102
    %1295 = vmatprep.subr.bf16.mxu0 %v1106
    %1296 = vmatpush1.bf16.msra.mxu0 %v1105
    %1297 = vmatprep.subr.bf16.mxu0 %v1109
    %1298 = vmatpush1.bf16.msra.mxu0 %v1108
    %1299 = vmatprep.subr.bf16.mxu0 %v1112
    %1300 = vmatpush1.bf16.msra.mxu0 %v1111
    %1301 = vmatprep.subr.bf16.mxu0 %v1115
    %1302 = vmatpush1.bf16.msra.mxu0 %v1114
    %1303 = vmatprep.subr.bf16.mxu0 %v1118
    %1304 = vmatpush1.bf16.msra.mxu0 %v1117
    %1305 = vmatprep.subr.bf16.mxu0 %v1121
    %1306 = vmatpush1.bf16.msra.mxu0 %v1120
    %1307 = vmatprep.subr.bf16.mxu0 %v1124
    %1308 = vmatpush1.bf16.msra.mxu0 %v1123
    %1309 = vmatprep.subr.bf16.mxu0 %v1127
    %1310 = vmatpush1.bf16.msra.mxu0 %v1126
    %1311 = vmatprep.subr.bf16.mxu0 %v1130
    %1312 = vmatpush1.bf16.msra.mxu0 %v1129
    %1313 = vmatprep.subr.bf16.mxu0 %v1133
    %1314 = vmatpush1.bf16.msra.mxu0 %v1132
    %1315 = vmatprep.subr.bf16.mxu0 %v1136
    %1316 = vmatpush1.bf16.msra.mxu0 %v1135
    %1317 = vmatprep.subr.bf16.mxu0 %v1139
    %1318 = vmatpush1.bf16.msra.mxu0 %v1138
    %1319 = vmatprep.subr.bf16.mxu0 %v1142
    %1320 = vmatpush1.bf16.msra.mxu0 %v1141
    %1321 = vmatprep.subr.bf16.mxu0 %v1145
    %1322 = vmatpush1.bf16.msra.mxu0 %v1144
    %1323 = vmatprep.mubr.bf16.mxu0 %v404
    %1324 = vmatmul.mubr.bf16.gmra.mrb[0].mxu0 %v403
    %v1325 = vpop.f32.mrb[0].mxu0
    %v1326 = vadd.f32 %v730, %v1325
    %v1327 = vpop.f32.mrb[0].mxu0
    %v1328 = vadd.f32 %v732, %v1327
    %v1329 = vpop.f32.mrb[0].mxu0
    %v1330 = vadd.f32 %v734, %v1329
    %v1331 = vpop.f32.mrb[0].mxu0
    %v1332 = vadd.f32 %v736, %v1331
    %1333 = vdwg.mxu0
    %1334 = vmatprep.subr.bf16.mxu0 %v1148
    %1335 = vmatpush1.bf16.msra.mxu0 %v1147
    %1336 = vmatprep.subr.bf16.mxu0 %v1151
    %1337 = vmatpush1.bf16.msra.mxu0 %v1150
    %1338 = vmatprep.subr.bf16.mxu0 %v1154
    %1339 = vmatpush1.bf16.msra.mxu0 %v1153
    %1340 = vmatprep.subr.bf16.mxu0 %v1157
    %1341 = vmatpush1.bf16.msra.mxu0 %v1156
    %1342 = vmatprep.subr.bf16.mxu0 %v1160
    %1343 = vmatpush1.bf16.msra.mxu0 %v1159
    %1344 = vmatprep.subr.bf16.mxu0 %v1163
    %1345 = vmatpush1.bf16.msra.mxu0 %v1162
    %1346 = vmatprep.subr.bf16.mxu0 %v1166
    %1347 = vmatpush1.bf16.msra.mxu0 %v1165
    %1348 = vmatprep.subr.bf16.mxu0 %v1169
    %1349 = vmatpush1.bf16.msra.mxu0 %v1168
    %1350 = vmatprep.subr.bf16.mxu0 %v1172
    %1351 = vmatpush1.bf16.msra.mxu0 %v1171
    %1352 = vmatprep.subr.bf16.mxu0 %v1175
    %1353 = vmatpush1.bf16.msra.mxu0 %v1174
    %1354 = vmatprep.subr.bf16.mxu0 %v1178
    %1355 = vmatpush1.bf16.msra.mxu0 %v1177
    %1356 = vmatprep.subr.bf16.mxu0 %v1181
    %1357 = vmatpush1.bf16.msra.mxu0 %v1180
    %1358 = vmatprep.subr.bf16.mxu0 %v1184
    %1359 = vmatpush1.bf16.msra.mxu0 %v1183
    %1360 = vmatprep.subr.bf16.mxu0 %v1187
    %1361 = vmatpush1.bf16.msra.mxu0 %v1186
    %1362 = vmatprep.subr.bf16.mxu0 %v1190
    %1363 = vmatpush1.bf16.msra.mxu0 %v1189
    %1364 = vmatprep.subr.bf16.mxu0 %v1193
    %1365 = vmatpush1.bf16.msra.mxu0 %v1192
    %1366 = vmatprep.mubr.bf16.mxu0 %v406
    %1367 = vmatmul.mubr.bf16.gmra.mrb[0].mxu0 %v405
    %v1368 = vpop.f32.mrb[0].mxu0
    %v1369 = vadd.f32 %v1326, %v1368
    %v1370 = vpop.f32.mrb[0].mxu0
    %v1371 = vadd.f32 %v1328, %v1370
    %v1372 = vpop.f32.mrb[0].mxu0
    %v1373 = vadd.f32 %v1330, %v1372
    %v1374 = vpop.f32.mrb[0].mxu0
    %v1375 = vadd.f32 %v1332, %v1374
    %1376 = vdwg.mxu0
    %1377 = vmatprep.subr.bf16.mxu0 0
    %1378 = vmatpush1.bf16.msra.mxu0 %v1101
    %1379 = vmatprep.subr.bf16.mxu0 0
    %1380 = vmatpush1.bf16.msra.mxu0 %v1104
    %1381 = vmatprep.subr.bf16.mxu0 0
    %1382 = vmatpush1.bf16.msra.mxu0 %v1107
    %1383 = vmatprep.subr.bf16.mxu0 0
    %1384 = vmatpush1.bf16.msra.mxu0 %v1110
    %1385 = vmatprep.subr.bf16.mxu0 0
    %1386 = vmatpush1.bf16.msra.mxu0 %v1113
    %1387 = vmatprep.subr.bf16.mxu0 0
    %1388 = vmatpush1.bf16.msra.mxu0 %v1116
    %1389 = vmatprep.subr.bf16.mxu0 0
    %1390 = vmatpush1.bf16.msra.mxu0 %v1119
    %1391 = vmatprep.subr.bf16.mxu0 0
    %1392 = vmatpush1.bf16.msra.mxu0 %v1122
    %1393 = vmatprep.subr.bf16.mxu0 0
    %1394 = vmatpush1.bf16.msra.mxu0 %v1125
    %1395 = vmatprep.subr.bf16.mxu0 0
    %1396 = vmatpush1.bf16.msra.mxu0 %v1128
    %1397 = vmatprep.subr.bf16.mxu0 0
    %1398 = vmatpush1.bf16.msra.mxu0 %v1131
    %1399 = vmatprep.subr.bf16.mxu0 0
    %1400 = vmatpush1.bf16.msra.mxu0 %v1134
    %1401 = vmatprep.subr.bf16.mxu0 0
    %1402 = vmatpush1.bf16.msra.mxu0 %v1137
    %1403 = vmatprep.subr.bf16.mxu0 0
    %1404 = vmatpush1.bf16.msra.mxu0 %v1140
    %1405 = vmatprep.subr.bf16.mxu0 0
    %1406 = vmatpush1.bf16.msra.mxu0 %v1143
    %1407 = vmatprep.subr.bf16.mxu0 0
    %1408 = vmatpush1.bf16.msra.mxu0 %v1146
    %1409 = vmatprep.mubr.bf16.mxu0 %v404
    %1410 = vmatmul.mubr.bf16.gmra.mrb[0].mxu0 %v403
    %v1411 = vpop.f32.mrb[0].mxu0
    %v1412 = vadd.f32 %v773, %v1411
    %v1413 = vpop.f32.mrb[0].mxu0
    %v1414 = vpop.f32.mrb[0].mxu0
    %v1415 = vadd.f32 %v776, %v1414
    %v1416 = vpop.f32.mrb[0].mxu0
    %1417 = vdwg.mxu0
    %1418 = vmatprep.subr.bf16.mxu0 0
    %1419 = vmatpush1.bf16.msra.mxu0 %v1149
    %1420 = vmatprep.subr.bf16.mxu0 0
    %1421 = vmatpush1.bf16.msra.mxu0 %v1152
    %1422 = vmatprep.subr.bf16.mxu0 0
    %1423 = vmatpush1.bf16.msra.mxu0 %v1155
    %1424 = vmatprep.subr.bf16.mxu0 0
    %1425 = vmatpush1.bf16.msra.mxu0 %v1158
    %1426 = vmatprep.subr.bf16.mxu0 0
    %1427 = vmatpush1.bf16.msra.mxu0 %v1161
    %1428 = vmatprep.subr.bf16.mxu0 0
    %1429 = vmatpush1.bf16.msra.mxu0 %v1164
    %1430 = vmatprep.subr.bf16.mxu0 0
    %1431 = vmatpush1.bf16.msra.mxu0 %v1167
    %1432 = vmatprep.subr.bf16.mxu0 0
    %1433 = vmatpush1.bf16.msra.mxu0 %v1170
    %1434 = vmatprep.subr.bf16.mxu0 0
    %1435 = vmatpush1.bf16.msra.mxu0 %v1173
    %1436 = vmatprep.subr.bf16.mxu0 0
    %1437 = vmatpush1.bf16.msra.mxu0 %v1176
    %1438 = vmatprep.subr.bf16.mxu0 0
    %1439 = vmatpush1.bf16.msra.mxu0 %v1179
    %1440 = vmatprep.subr.bf16.mxu0 0
    %1441 = vmatpush1.bf16.msra.mxu0 %v1182
    %1442 = vmatprep.subr.bf16.mxu0 0
    %1443 = vmatpush1.bf16.msra.mxu0 %v1185
    %1444 = vmatprep.subr.bf16.mxu0 0
    %1445 = vmatpush1.bf16.msra.mxu0 %v1188
    %1446 = vmatprep.subr.bf16.mxu0 0
    %1447 = vmatpush1.bf16.msra.mxu0 %v1191
    %1448 = vmatprep.subr.bf16.mxu0 0
    %1449 = vmatpush1.bf16.msra.mxu0 %v1194
    %1450 = vmatprep.mubr.bf16.mxu0 %v406
    %1451 = vmatmul.mubr.bf16.gmra.mrb[0].mxu0 %v405
    %v1452 = vpop.f32.mrb[0].mxu0
    %v1453 = vadd.f32 %v1412, %v1452
    %v1454 = vpop.f32.mrb[0].mxu0
    %v1455 = vpop.f32.mrb[0].mxu0
    %v1456 = vadd.f32 %v1415, %v1455
    %v1457 = vpop.f32.mrb[0].mxu0
    %1458 = vdwg.mxu0
    %v1459 = vld [vmem:[%s5] sm:$0x7]
    %v1461 = vlaneseq
    %v1462 = vshrl.u32 %v1461, 7
    %v1463 = vsub.s32 0, %v1462
    %v1464 = vrot.slane %v1459, %v1463
    %v1465 = vlaneseq
    %v1466 = vshrl.u32 %v1465, 7
    %v1467 = vsub.s32 1, %v1466
    %v1468 = vrot.slane %v1459, %v1467
    %v1469 = vlaneseq
    %v1470 = vshrl.u32 %v1469, 7
    %v1471 = vsub.s32 2, %v1470
    %v1472 = vrot.slane %v1459, %v1471
    %v1476 = vadd.f32 %v1369, %v1464
    %v1477 = vadd.f32 %v1371, %v1468
    %v1478 = vadd.f32 %v1453, %v1472
    %v1479 = vadd.f32 %v1373, %v1464
    %v1480 = vadd.f32 %v1375, %v1468
    %v1481 = vadd.f32 %v1456, %v1472
    %v1482 = vmax.f32 %v1476, 0.0
    %v1483 = vmax.f32 %v1477, 0.0
    %v1484 = vmax.f32 %v1478, 0.0
    %v1485 = vmax.f32 %v1479, 0.0
    %v1486 = vmax.f32 %v1480, 0.0
    %v1487 = vmax.f32 %v1481, 0.0
    %v1488 = vld [vmem:[%s6] sm:$0x7]
    %v1490 = vlaneseq
    %v1491 = vshrl.u32 %v1490, 7
    %v1492 = vsub.s32 0, %v1491
    %v1493 = vrot.slane %v1488, %v1492
    %v1494 = vlaneseq
    %v1495 = vshrl.u32 %v1494, 7
    %v1496 = vsub.s32 1, %v1495
    %v1497 = vrot.slane %v1488, %v1496
    %v1498 = vlaneseq
    %v1499 = vshrl.u32 %v1498, 7
    %v1500 = vsub.s32 2, %v1499
    %v1501 = vrot.slane %v1488, %v1500
    %v1505 = vmul.f32 %v1482, %v1493
    %v1506 = vmul.f32 %v1483, %v1497
    %v1507 = vmul.f32 %v1484, %v1501
    %v1508 = vmul.f32 %v1485, %v1493
    %v1509 = vmul.f32 %v1486, %v1497
    %v1510 = vmul.f32 %v1487, %v1501
    %v1511 = vadd.f32 %v1505, %v1506
    %v1512 = vadd.f32 %v1511, %v1507
    %1513 = vadd.xlane.f32.xlu0 %v1512
    %v1514 = vpop.xlane.xlu0 %1513
    %v1515 = vadd.f32 %v1508, %v1509
    %v1516 = vadd.f32 %v1515, %v1510
    %1517 = vadd.xlane.f32.xlu0 %v1516
    %v1518 = vpop.xlane.xlu0 %1517
    %v1519 = vld [vmem:[#allocation2] sm:$0x1]
    %v1521 = vlaneseq
    %v1522 = vshrl.u32 %v1521, 7
    %v1523 = vsub.s32 0, %v1522
    %v1524 = vrot.slane %v1519, %v1523
    %v1526 = vadd.f32 %v1514, %v1524
    %v1527 = vadd.f32 %v1518, %v1524
    %vm1528 = vcmask 7168
    %1529 = vst.msk [vmem:[%s8] sm:$0xff] %vm1528, %v1526
    %1530 = vst.msk [vmem:[%s8 + $0x8] sm:$0xff] %vm1528, %v1527
    // Predicated region
    $region50: #{tpu_custom_call.1} parent=1 // pred_check
      _
    $region51: #{tpu_custom_call.1} parent=1 // pred_check_branch
      %1532 = sbr.rel (0) target = $region53
    $region52: #{tpu_custom_call.1} parent=1 // pred_region
      _
    $region53: #{tpu_custom_call.1} parent=1 // pred_fallthru
      _
    // Predicated region
    $region54: #{tpu_custom_call.1} parent=1 // pred_check
      _
    $region55: #{tpu_custom_call.1} parent=1 // pred_check_branch
      %1534 = sbr.rel (0) target = $region57
    $region56: #{tpu_custom_call.1} parent=1 // pred_region
      _
    $region57: #{tpu_custom_call.1} parent=1 // pred_fallthru
      _
    %1535 = vsyncpa [#allocation4], 1
    %1536 = vsyncpa [#allocation6], 1
    %1537 = vsyncpa [#allocation9], 1

</llo_original>
